<compile_context>
chip_gen: v5e
topology: v5e:2x2
jax: 0.10.0
libtpu: 0.0.40
codegen_flags: <defaults>
</compile_context>

<pallas_src>
import functools

import jax
import jax.numpy as jnp
from jax.experimental import pallas as pl
from jax.experimental.pallas import tpu as pltpu

LABEL_SMOOTHING = 0.1


def _ce_label_smoothing_kernel(logits_ref, labels_ref, out_ref, *, n_total, tile_n, eps):
    # logits_ref: (TN, C) native dtype in VMEM
    # labels_ref: (TN, 1) int32 in VMEM
    # out_ref:    (1, 8, 128) float32 per-tile partial-sum block (own block per grid
    #             step -> no resident accumulator -> batch axis can be "parallel")
    i = pl.program_id(0)

    x = logits_ref[...].astype(jnp.float32)                  # (TN, C), upcast in-kernel
    y = labels_ref[...]                                      # (TN, 1) int32
    tn, c = x.shape

    # Fused label-smoothed CE (3 cross-lane reductions: max, sum-exp, weighted sum):
    #   loss_i = m_i + lse_i - sum_c w_c * x[i, c]
    #   w_c    = eps/C + (1 - eps) * [c == y_i]
    # NOTE: eps/c uses the block class extent, correct only while the class axis is
    #       un-tiled (block c == full C), which this kernel guarantees.
    m = jnp.max(x, axis=-1, keepdims=True)                                   # (TN, 1)
    lse = jnp.log(jnp.sum(jnp.exp(x - m), axis=-1, keepdims=True))           # (TN, 1)

    cols = jax.lax.broadcasted_iota(jnp.int32, (tn, c), 1)
    w = jnp.where(cols == y, (1.0 - eps) + eps / c, eps / c)                 # (TN, C)
    wx = jnp.sum(w * x, axis=-1, keepdims=True)                              # (TN, 1)

    per_sample = m + lse - wx                                                # (TN, 1)

    # Mask rows beyond N (padded rows of a partial last tile read stale VMEM); the
    # elementwise select discards any Inf/NaN they produced BEFORE the reduction.
    rows = i * tile_n + jax.lax.broadcasted_iota(jnp.int32, (tn, 1), 0)
    per_sample = jnp.where(rows < n_total, per_sample, 0.0)

    partial = jnp.sum(per_sample)
    out_ref[...] = jnp.full(out_ref.shape, partial, dtype=jnp.float32)       # unmasked lane-dense store


def _pick_tile_n(n: int, c: int, itemsize: int) -> int:
    # Per-row bytes: double-buffered native inputs (logits row + int32 label) plus
    # ~3 f32 (TN, C) working intermediates for the in-kernel upcast/exp/weights.
    # Target ~20 MiB total so the working set fits the scoped-VMEM budget on
    # v5e/v6e/v7x alike; no row cap -> large row blocks amortize the ~0.35us/step
    # fixed grid overhead for small-C shapes.
    per_row = 2 * (c * itemsize + 4) + 3 * c * 4
    tn = (20 * 1024 * 1024) // max(per_row, 1)
    if tn >= n:
        return n                    # single block == full array dims (always legal)
    return max(8, (tn // 8) * 8)    # multiple of 8 sublanes


def basic_classification_loss(logits: jax.Array, labels: jax.Array, *, tile_n: int | None = None) -> jax.Array:
    """cls_loss = CrossEntropyLoss(label_smoothing=0.1)(logits, labels), mean-reduced."""
    n, c = logits.shape
    labels2d = labels.astype(jnp.int32).reshape(n, 1)

    itemsize = jnp.dtype(logits.dtype).itemsize
    tn = tile_n if tile_n is not None else _pick_tile_n(n, c, itemsize)
    num_tiles = (n + tn - 1) // tn

    # VMEM budget: 2x double-buffered inputs + f32 working-set headroom + outputs + slack.
    in_bytes = tn * c * itemsize + tn * 4
    vmem_limit = 2 * in_bytes + 4 * tn * c * 4 + 2 * 8 * 128 * 4 + (2 << 20)
    vmem_limit = max(4 << 20, min(vmem_limit, 32 << 20))

    kernel = functools.partial(
        _ce_label_smoothing_kernel, n_total=n, tile_n=tn, eps=LABEL_SMOOTHING)

    cost = pl.CostEstimate(
        flops=6 * n * c,
        transcendentals=n * c + n,
        bytes_accessed=n * c * itemsize + n * 4 + num_tiles * 8 * 128 * 4,
    )

    partials = pl.pallas_call(
        kernel,
        out_shape=jax.ShapeDtypeStruct((num_tiles, 8, 128), jnp.float32),
        grid=(num_tiles,),
        in_specs=[
            pl.BlockSpec((tn, c), lambda i: (i, 0)),     # logits tile (class axis un-tiled, lane-dense)
            pl.BlockSpec((tn, 1), lambda i: (i, 0)),     # labels tile (minor traffic, acceptable)
        ],
        out_specs=pl.BlockSpec((1, 8, 128), lambda i: (i, 0, 0)),  # one aligned block per tile
        compiler_params=pltpu.CompilerParams(
            dimension_semantics=("parallel",),           # batch tiles are independent -> megacore on v7x
            vmem_limit_bytes=vmem_limit,
        ),
        cost_estimate=cost,
    )(logits, labels2d)                                   # NOTE: no wrapper-side f32 cast of logits

    # Final tree-sum of per-tile partials + mean in the wrapper.
    return jnp.sum(partials[:, 0, 0]) / jnp.float32(n)


def _reference_loss(logits, labels, eps=LABEL_SMOOTHING):
    # pure-JAX reference (matches torch.nn.CrossEntropyLoss(label_smoothing=eps), mean)
    logits = logits.astype(jnp.float32)
    n, c = logits.shape
    log_p = jax.nn.log_softmax(logits, axis=-1)
    onehot = jax.nn.one_hot(labels, c, dtype=jnp.float32)
    target = onehot * (1.0 - eps) + eps / c
    return jnp.mean(-jnp.sum(target * log_p, axis=-1))


if __name__ == "__main__":
    key = jax.random.PRNGKey(0)
    k_logits, k_labels = jax.random.split(key)

    # Small classification-style shapes: batch=8 samples, 32 classes.
    N, C = 8, 32
    logits = jax.random.normal(k_logits, (N, C), dtype=jnp.float32)
    labels = jax.random.randint(k_labels, (N,), 0, C, dtype=jnp.int32)

    cls_loss = basic_classification_loss(logits, labels)
    jax.block_until_ready(cls_loss)
    ref = _reference_loss(logits, labels)
    assert jnp.allclose(cls_loss, ref, atol=1e-5, rtol=1e-5), (cls_loss, ref)

    # Multi-tile grid with a partial (masked) last tile to exercise the parallel
    # per-tile-partial path.
    N2, C2 = 20, 128
    k2a, k2b = jax.random.split(jax.random.PRNGKey(1))
    logits2 = jax.random.normal(k2a, (N2, C2), dtype=jnp.float32)
    labels2 = jax.random.randint(k2b, (N2,), 0, C2, dtype=jnp.int32)
    cls_loss2 = basic_classification_loss(logits2, labels2, tile_n=8)
    jax.block_until_ready(cls_loss2)
    ref2 = _reference_loss(logits2, labels2)
    assert jnp.allclose(cls_loss2, ref2, atol=1e-5, rtol=1e-5), (cls_loss2, ref2)

    # Native-dtype (bf16) ingestion path; compute is f32 in-kernel, same as reference.
    N3, C3 = 24, 64
    k3a, k3b = jax.random.split(jax.random.PRNGKey(2))
    logits3 = jax.random.normal(k3a, (N3, C3), dtype=jnp.bfloat16)
    labels3 = jax.random.randint(k3b, (N3,), 0, C3, dtype=jnp.int32)
    cls_loss3 = basic_classification_loss(logits3, labels3, tile_n=8)
    jax.block_until_ready(cls_loss3)
    ref3 = _reference_loss(logits3, labels3)
    assert jnp.allclose(cls_loss3, ref3, atol=1e-4, rtol=1e-4), (cls_loss3, ref3)

    print("KERNEL_OK")
</pallas_src>

<mosaic_0001>
module attributes {stable_mosaic.version = 11 : i64} {
  func.func @_ce_label_smoothing_kernel(%arg0: i32, %arg1: memref<8x32xf32, #tpu.memory_space<vmem>>, %arg2: memref<8x1xi32, #tpu.memory_space<vmem>>, %arg3: memref<1x8x128xf32, #tpu.memory_space<vmem>>) attributes {dimension_semantics = [#tpu.dimension_semantics<parallel>], iteration_bounds = array<i64: 1>, scalar_prefetch = 0 : i64, scratch_operands = 0 : i64, tpu.core_type = #tpu.core_type<tc>, window_params = [{transform_indices = @transform_0, window_bounds = array<i64: 8, 32>}, {transform_indices = @transform_1, window_bounds = array<i64: 8, 1>}, {transform_indices = @transform_2, window_bounds = array<i64: 1, 8, 128>}]} {
    %c0 = arith.constant 0 : index
    %c0_0 = arith.constant 0 : index
    %0 = vector.load %arg1[%c0, %c0_0] : memref<8x32xf32, #tpu.memory_space<vmem>>, vector<8x32xf32>
    %c0_1 = arith.constant 0 : index
    %c0_2 = arith.constant 0 : index
    %1 = vector.load %arg2[%c0_1, %c0_2] : memref<8x1xi32, #tpu.memory_space<vmem>>, vector<8x1xi32>
    %cst = arith.constant dense<0xFF800000> : vector<8xf32>
    %2 = vector.multi_reduction <maximumf>, %0, %cst [1] : vector<8x32xf32> to vector<8xf32>
    %3 = vector.shape_cast %2 : vector<8xf32> to vector<8x1xf32>
    %4 = vector.broadcast %3 : vector<8x1xf32> to vector<8x32xf32>
    %5 = arith.subf %0, %4 : vector<8x32xf32>
    %6 = math.exp %5 : vector<8x32xf32>
    %cst_3 = arith.constant dense<0.000000e+00> : vector<8xf32>
    %7 = vector.multi_reduction <add>, %6, %cst_3 [1] : vector<8x32xf32> to vector<8xf32>
    %8 = vector.shape_cast %7 : vector<8xf32> to vector<8x1xf32>
    %9 = math.log %8 : vector<8x1xf32>
    %10 = tpu.iota {dimensions = array<i32: 1>} : vector<8x32xi32>
    %11 = vector.broadcast %1 : vector<8x1xi32> to vector<8x32xi32>
    %12 = arith.cmpi eq, %10, %11 : vector<8x32xi32>
    %cst_4 = arith.constant 0.903124988 : f32
    %cst_5 = arith.constant 3.125000e-03 : f32
    %13 = vector.broadcast %cst_4 : f32 to vector<8x32xf32>
    %14 = vector.broadcast %cst_5 : f32 to vector<8x32xf32>
    %15 = arith.select %12, %13, %14 : vector<8x32xi1>, vector<8x32xf32>
    %16 = arith.mulf %15, %0 : vector<8x32xf32>
    %cst_6 = arith.constant dense<0.000000e+00> : vector<8xf32>
    %17 = vector.multi_reduction <add>, %16, %cst_6 [1] : vector<8x32xf32> to vector<8xf32>
    %18 = vector.shape_cast %17 : vector<8xf32> to vector<8x1xf32>
    %19 = arith.addf %3, %9 : vector<8x1xf32>
    %20 = arith.subf %19, %18 : vector<8x1xf32>
    %c8_i32 = arith.constant 8 : i32
    %21 = arith.muli %arg0, %c8_i32 : i32
    %22 = tpu.iota {dimensions = array<i32: 0>} : vector<8x1xi32>
    %23 = vector.broadcast %21 : i32 to vector<8x1xi32>
    %24 = arith.addi %23, %22 : vector<8x1xi32>
    %c8_i32_7 = arith.constant 8 : i32
    %25 = vector.broadcast %c8_i32_7 : i32 to vector<8x1xi32>
    %26 = arith.cmpi slt, %24, %25 : vector<8x1xi32>
    %cst_8 = arith.constant 0.000000e+00 : f32
    %27 = vector.broadcast %cst_8 : f32 to vector<8x1xf32>
    %28 = arith.select %26, %20, %27 : vector<8x1xi1>, vector<8x1xf32>
    %29 = vector.shape_cast %28 : vector<8x1xf32> to vector<1x8x1xf32>
    %cst_9 = arith.constant dense<0.000000e+00> : vector<1xf32>
    %30 = vector.multi_reduction <add>, %29, %cst_9 [1, 2] : vector<1x8x1xf32> to vector<1xf32>
    %31 = vector.shape_cast %30 : vector<1xf32> to vector<1x1x1xf32>
    %32 = vector.extract %31[0, 0, 0] : f32 from vector<1x1x1xf32>
    %33 = vector.broadcast %32 : f32 to vector<1x8x128xf32>
    %c0_10 = arith.constant 0 : index
    %c0_11 = arith.constant 0 : index
    %c0_12 = arith.constant 0 : index
    %34 = vector.load %arg3[%c0_10, %c0_11, %c0_12] : memref<1x8x128xf32, #tpu.memory_space<vmem>>, vector<1x8x128xf32>
    tpu.vector_store %arg3[%c0_10, %c0_11, %c0_12], %33 {strides = array<i32>} : memref<1x8x128xf32, #tpu.memory_space<vmem>>, vector<1x8x128xf32>,
    return
  }
  func.func @transform_0(%arg0: i32) -> (i32, i32) {
    %c0_i32 = arith.constant 0 : i32
    %c0_i32_0 = arith.constant 0 : i32
    return %arg0, %c0_i32 : i32, i32
  }
  func.func @transform_1(%arg0: i32) -> (i32, i32) {
    %c0_i32 = arith.constant 0 : i32
    %c0_i32_0 = arith.constant 0 : i32
    return %arg0, %c0_i32 : i32, i32
  }
  func.func @transform_2(%arg0: i32) -> (i32, i32, i32) {
    %c0_i32 = arith.constant 0 : i32
    %c0_i32_0 = arith.constant 0 : i32
    %c0_i32_1 = arith.constant 0 : i32
    return %arg0, %c0_i32, %c0_i32_0 : i32, i32, i32
  }
}

</mosaic_0001>

<llo_original>
// kernel: tpu_custom_call.1
$region0: #{tpu_custom_call.1}
  #allocation0 [shape = 'u32[]', space=smem, size = 0x4, offset = 0x4, fixed_abs, tag = 'smem constant byte address 0x4 - core index']
  #allocation1 [shape = 'u32[72,128]{1,0:T(1,128)}', space=vmem, size = 0x9000, scoped, tag = 'internal scratch']
  %s0 = inlined_call_operand.vmem [shape: f32[8,32], index: 0, kind: input, shape index: {}]
  %s1 = inlined_call_operand.vmem [shape: s32[8,1], index: 1, kind: input, shape index: {}]
  %s2 = inlined_call_operand.hbm [shape: f32[1,8,128], index: 2, kind: output, shape index: {}]
  %s3 = sld [smem:[#allocation0]]
  $region18: #{tpu_custom_call.1} parent=0
    _
  %s5 = ssub.s32 1, %s3
  %s6 = scalar_select 0, %s5, %s3
  $region1: #{tpu_custom_call.1} parent=0
    #allocation2 [shape = 'u8[4096]{0}', space=vmem, size = 0x1000, scoped, tag = 'output window, operand 0, single buffered']
    #allocation3 [shape = 's32[1]{0}', space=sflag, size = 0x4, scoped, tag = 'scoped memory for tpu_custom_call.1']
    %7 = vsyncpa [#allocation3], 0
    // Predicated region
    $region2: #{tpu_custom_call.1} parent=1 // pred_check
      _
    $region3: #{tpu_custom_call.1} parent=1 // pred_check_branch
      %9 = sbr.rel (0) target = $region5
    $region4: #{tpu_custom_call.1} parent=1 // pred_region
      _
    $region5: #{tpu_custom_call.1} parent=1 // pred_fallthru
      _
    // Predicated region
    $region6: #{tpu_custom_call.1} parent=1 // pred_check
      _
    $region7: #{tpu_custom_call.1} parent=1 // pred_check_branch
      %11 = sbr.rel (0) target = $region9
    $region8: #{tpu_custom_call.1} parent=1 // pred_region
      _
    $region9: #{tpu_custom_call.1} parent=1 // pred_fallthru
      _
    %v12 = vld [vmem:[%s0] sm:$0xff]
    %v13 = vld [vmem:[%s1] sm:$0xff]
    %vm14 = vcmask 261120
    %v15 = vsel %vm14, %v12, -inf
    %16 = vmax.xlane.f32.xlu0 %v15
    %v17 = vpop.xlane.xlu0 %16
    %v18 = vsub.f32 %v12, %v17
    %v19 = vmul.f32 %v18, 1.442695
    %v20 = vpow.pop %v19
    %v21 = vsel %vm14, %v20, 0.0
    %22 = vadd.xlane.f32.xlu0 %v21
    %v23 = vpop.xlane.xlu0 %22
    %v24 = vlog2.pop %v23
    %v25 = vmul.f32 %v24, 0.6931472
    %v26 = vlaneseq
    %v27 = vand.u32 %v26, 127
    %28 = vset.pattern.permute.xlu0 0
    %29 = vperm.xlu0 %28, %v13
    %v30 = vpop.permute.xlu0 %29
    %vm31 = vcmp.eq.s32.totalorder %v27, %v30
    %v32 = vsel %vm31, 0.903125, 0.003125
    %v33 = vmul.f32 %v32, %v12
    %v34 = vsel %vm14, %v33, 0.0
    %35 = vadd.xlane.f32.xlu0 %v34
    %v36 = vpop.xlane.xlu0 %35
    %v37 = vadd.f32 %v17, %v25
    %v38 = vsub.f32 %v37, %v36
    %s39 = smul.u32 0, 8
    %v40 = vlaneseq
    %v41 = vshrl.u32 %v40, 7
    %v42 = vstv %s39
    %v43 = vadd.s32 %v42, %v41
    %vm44 = vcmp.lt.s32.totalorder %v43, 8
    %v45 = vsel %vm44, %v38, 0.0
    %vm46 = vcmask 7168
    %v47 = vsel %vm46, %v45, 0.0
    %48 = vadd.xlane.f32.xlu0 %v47
    %v49 = vpop.xlane.xlu0 %48
    %v50 = vrot.slane %v49, 4
    %v51 = vadd.f32 %v49, %v50
    %v52 = vrot.slane %v51, 2
    %v53 = vadd.f32 %v51, %v52
    %v54 = vrot.slane %v53, 1
    %v55 = vadd.f32 %v53, %v54
    %s56 = vtos %v55
    %v57 = vstv %s56
    %58 = vst [vmem:[#allocation2] sm:$0xff] %v57
    // Predicated region
    $region10: #{tpu_custom_call.1} parent=1 // pred_check
      _
    $region11: #{tpu_custom_call.1} parent=1 // pred_check_branch
      %60 = sbr.rel (0) target = $region13
    $region12: #{tpu_custom_call.1} parent=1 // pred_region
      %62 = vsyncadd [#allocation3], 0
      %s64 = sshll.u32 [#allocation2], 4
      %s65 = int_to_ptr.vmem [resolvable:$true] %s64
      %s66 = sshll.u32 %s2, 4
      %s67 = int_to_ptr.hbm [resolvable:$true] %s66
      %69 = dma.vmem_to_hbm [thread:$0]  %s65, 128, %s67, [#allocation3]
    $region13: #{tpu_custom_call.1} parent=1 // pred_fallthru
      _
    // Predicated region
    $region14: #{tpu_custom_call.1} parent=1 // pred_check
      _
    $region15: #{tpu_custom_call.1} parent=1 // pred_check_branch
      %71 = sbr.rel (0) target = $region17
    $region16: #{tpu_custom_call.1} parent=1 // pred_region
      %73 = dma.done [#allocation3], 128
    $region17: #{tpu_custom_call.1} parent=1 // pred_fallthru
      _
    %74 = vsyncpa [#allocation3], 1

</llo_original>
